<compile_context>
chip_gen: v7x
topology: tpu7x:2x2x1
jax: 0.10.0
libtpu: 0.0.40
codegen_flags: <defaults>
</compile_context>

<pallas_src>
import jax
import jax.numpy as jnp
from jax.experimental import pallas as pl
from jax.experimental.pallas import tpu as pltpu


def _pooler_kernel_bias(x_ref, w_ref, b_ref, out_ref):
    # x_ref: (tm, H)  first-token rows (native dtype)
    # w_ref: (H, tn)  weight column slab, (in x out) layout
    # b_ref: (1, tn)  bias slab
    # out_ref: (tm, tn)
    acc = jnp.dot(x_ref[...], w_ref[...], preferred_element_type=jnp.float32)
    acc = acc + b_ref[...].astype(jnp.float32)
    out_ref[...] = jnp.tanh(acc).astype(out_ref.dtype)


def _pooler_kernel_nobias(x_ref, w_ref, out_ref):
    acc = jnp.dot(x_ref[...], w_ref[...], preferred_element_type=jnp.float32)
    out_ref[...] = jnp.tanh(acc).astype(out_ref.dtype)


def _choose_block(dim, target, align):
    """Largest multiple of `align` that divides `dim` and is <= `target`;
    falls back to the full dim (full-array blocks are always legal)."""
    if dim <= target or dim % align != 0:
        return dim
    start = (target // align) * align
    for cand in range(start, 0, -align):
        if dim % cand == 0:
            return cand
    return dim


def _vmem_estimate(tm, tn, H, itemsize):
    # double-buffered x tile + weight slab + bias + output tile, plus slack
    return 2 * (tm * H + H * tn + tn + tm * tn) * itemsize + (1 << 20)


def pooler_forward(hidden_states, dense_w, dense_b=None, *, tm=None, tn=None):
    """hidden_states: [B, S, H] -> pooled [B, H] = tanh(hidden_states[:,0] @ W + b).

    dense_w is stored (in x out), i.e. the transpose of torch.nn.Linear.weight.
    dense_b may be None (config.add_linear_bias == False).
    """
    B, S, H = hidden_states.shape
    x = hidden_states[:, 0, :]  # [B, H] first-token slice (cheap, done once)

    itemsize = jnp.dtype(hidden_states.dtype).itemsize

    if tm is None:
        tm = _choose_block(B, 256, 8)     # row tile over batch
    if tn is None:
        tn = _choose_block(H, 512, 128)   # lane-dense column tile over output H
        # Shrink tiles until the double-buffered working set fits per-TC VMEM
        # (64 MiB on v7x is the tightest target).
        while _vmem_estimate(tm, tn, H, itemsize) > 60 * 1024 * 1024:
            if tn > 128 and H % (tn // 2) == 0:
                tn //= 2
            elif tm > 8 and B % (tm // 2) == 0:
                tm //= 2
            else:
                break
    assert B % tm == 0 and H % tn == 0

    vmem_limit = min(max(_vmem_estimate(tm, tn, H, itemsize),
                         32 * 1024 * 1024), 64 * 1024 * 1024)

    x_spec = pl.BlockSpec((tm, H), lambda i, j: (i, 0))     # row tile, reused across j
    w_spec = pl.BlockSpec((H, tn), lambda i, j: (0, j))     # weight column slab
    out_spec = pl.BlockSpec((tm, tn), lambda i, j: (i, j))  # lane-dense output tile
    compiler_params = pltpu.CompilerParams(
        dimension_semantics=("parallel", "parallel"),
        vmem_limit_bytes=vmem_limit,
    )
    out_shape = jax.ShapeDtypeStruct((B, H), hidden_states.dtype)
    grid = (B // tm, H // tn)

    if dense_b is None:
        return pl.pallas_call(
            _pooler_kernel_nobias,
            out_shape=out_shape,
            grid_spec=pltpu.PrefetchScalarGridSpec(
                num_scalar_prefetch=0,
                grid=grid,
                in_specs=[x_spec, w_spec],
                out_specs=out_spec,
            ),
            compiler_params=compiler_params,
        )(x, dense_w)

    dense_b = dense_b.reshape(1, H)
    b_spec = pl.BlockSpec((1, tn), lambda i, j: (0, j))
    return pl.pallas_call(
        _pooler_kernel_bias,
        out_shape=out_shape,
        grid_spec=pltpu.PrefetchScalarGridSpec(
            num_scalar_prefetch=0,
            grid=grid,
            in_specs=[x_spec, w_spec, b_spec],
            out_specs=out_spec,
        ),
        compiler_params=compiler_params,
    )(x, dense_w, dense_b)


def init_params(key, hidden_size, dtype=jnp.float32, add_linear_bias=True):
    k1, k2 = jax.random.split(key)
    scale = 1.0 / jnp.sqrt(hidden_size)
    w = (jax.random.normal(k1, (hidden_size, hidden_size), dtype) * scale).astype(dtype)
    b = ((jax.random.normal(k2, (1, hidden_size), dtype) * 0.02).astype(dtype)
         if add_linear_bias else None)
    return w, b


def _reference(hidden_states, dense_w, dense_b):
    x = hidden_states[:, 0, :].astype(jnp.float32)
    y = x @ dense_w.astype(jnp.float32)
    if dense_b is not None:
        y = y + dense_b.astype(jnp.float32)
    return jnp.tanh(y).astype(hidden_states.dtype)


if __name__ == "__main__":
    B, S, H = 2, 8, 32
    key = jax.random.PRNGKey(0)
    kx, kp = jax.random.split(key)
    hidden_states = jax.random.normal(kx, (B, S, H), jnp.float32)

    # With bias (config.add_linear_bias = True)
    dense_w, dense_b = init_params(kp, H, add_linear_bias=True)
    pooled = jax.block_until_ready(pooler_forward(hidden_states, dense_w, dense_b))
    ref = _reference(hidden_states, dense_w, dense_b)
    assert pooled.shape == (B, H)
    assert jnp.allclose(pooled, ref, atol=1e-5, rtol=1e-5)

    # Without bias (config.add_linear_bias = False)
    pooled_nb = jax.block_until_ready(pooler_forward(hidden_states, dense_w, None))
    ref_nb = _reference(hidden_states, dense_w, None)
    assert jnp.allclose(pooled_nb, ref_nb, atol=1e-5, rtol=1e-5)

    print("KERNEL_OK")
</pallas_src>

<mosaic_0001>
module attributes {stable_mosaic.version = 11 : i64} {
  func.func @_pooler_kernel_bias(%arg0: i32, %arg1: i32, %arg2: memref<2x32xf32, #tpu.memory_space<vmem>>, %arg3: memref<32x32xf32, #tpu.memory_space<vmem>>, %arg4: memref<1x32xf32, #tpu.memory_space<vmem>>, %arg5: memref<2x32xf32, #tpu.memory_space<vmem>>) attributes {dimension_semantics = [#tpu.dimension_semantics<parallel>, #tpu.dimension_semantics<parallel>], iteration_bounds = array<i64: 1, 1>, scalar_prefetch = 0 : i64, scratch_operands = 0 : i64, tpu.core_type = #tpu.core_type<tc>, window_params = [{transform_indices = @transform_0, window_bounds = array<i64: 2, 32>}, {transform_indices = @transform_1, window_bounds = array<i64: 32, 32>}, {transform_indices = @transform_2, window_bounds = array<i64: 1, 32>}, {transform_indices = @transform_3, window_bounds = array<i64: 2, 32>}]} {
    %c0 = arith.constant 0 : index
    %c0_0 = arith.constant 0 : index
    %0 = vector.load %arg2[%c0, %c0_0] : memref<2x32xf32, #tpu.memory_space<vmem>>, vector<2x32xf32>
    %c0_1 = arith.constant 0 : index
    %c0_2 = arith.constant 0 : index
    %1 = vector.load %arg3[%c0_1, %c0_2] : memref<32x32xf32, #tpu.memory_space<vmem>>, vector<32x32xf32>
    %cst = arith.constant dense<0.000000e+00> : vector<2x32xf32>
    %2 = tpu.matmul %0, %1, %cst {dimension_numbers = #tpu.dot_dimension_numbers<[1], [0], [0], [1], [0, 0, 1, 1], [], []>} : vector<2x32xf32>, vector<32x32xf32>, vector<2x32xf32> -> vector<2x32xf32>
    %c0_3 = arith.constant 0 : index
    %c0_4 = arith.constant 0 : index
    %3 = vector.load %arg4[%c0_3, %c0_4] : memref<1x32xf32, #tpu.memory_space<vmem>>, vector<1x32xf32>
    %4 = vector.broadcast %3 : vector<1x32xf32> to vector<2x32xf32>
    %5 = arith.addf %2, %4 : vector<2x32xf32>
    %6 = math.tanh %5 : vector<2x32xf32>
    %c0_5 = arith.constant 0 : index
    %c0_6 = arith.constant 0 : index
    %7 = vector.load %arg5[%c0_5, %c0_6] : memref<2x32xf32, #tpu.memory_space<vmem>>, vector<2x32xf32>
    tpu.vector_store %arg5[%c0_5, %c0_6], %6 {strides = array<i32>} : memref<2x32xf32, #tpu.memory_space<vmem>>, vector<2x32xf32>,
    return
  }
  func.func @transform_0(%arg0: i32, %arg1: i32) -> (i32, i32) {
    %c0_i32 = arith.constant 0 : i32
    %c0_i32_0 = arith.constant 0 : i32
    return %arg0, %c0_i32 : i32, i32
  }
  func.func @transform_1(%arg0: i32, %arg1: i32) -> (i32, i32) {
    %c0_i32 = arith.constant 0 : i32
    %c0_i32_0 = arith.constant 0 : i32
    return %c0_i32, %arg1 : i32, i32
  }
  func.func @transform_2(%arg0: i32, %arg1: i32) -> (i32, i32) {
    %c0_i32 = arith.constant 0 : i32
    %c0_i32_0 = arith.constant 0 : i32
    return %c0_i32, %arg1 : i32, i32
  }
  func.func @transform_3(%arg0: i32, %arg1: i32) -> (i32, i32) {
    %c0_i32 = arith.constant 0 : i32
    return %arg0, %arg1 : i32, i32
  }
}

</mosaic_0001>

<llo_original>
// kernel: tpu_custom_call.1
$region0: #{tpu_custom_call.1}
  #allocation0 [shape = 'u32[]', space=smem, size = 0x4, offset = 0x4, fixed_abs, tag = 'smem constant byte address 0x4 - core index']
  #allocation1 [shape = 'u32[144,128]{1,0:T(1,128)}', space=vmem, size = 0x12000, scoped, tag = 'internal scratch']
  %s0 = inlined_call_operand.hbm [shape: f32[2,32], index: 0, kind: input, shape index: {}]
  %s1 = inlined_call_operand.hbm [shape: f32[32,32], index: 1, kind: input, shape index: {}]
  %s2 = inlined_call_operand.vmem [shape: f32[1,32], index: 2, kind: input, shape index: {}]
  %s3 = inlined_call_operand.hbm [shape: f32[2,32], index: 3, kind: output, shape index: {}]
  %s4 = sld [smem:[#allocation0]]
  $region30: #{tpu_custom_call.1} parent=0
    _
  %s6 = ssub.s32 1, %s4
  %s7 = scalar_select 0, %s6, %s4
  $region1: #{tpu_custom_call.1} parent=0
    #allocation2 [shape = 'u8[1024]{0}', space=vmem, size = 0x400, scoped, tag = 'input window, operand 0, single buffered']
    #allocation3 [shape = 's32[1]{0}', space=sflag, size = 0x4, scoped, tag = 'scoped memory for tpu_custom_call.1']
    #allocation4 [shape = 's32[1]{0}', space=sflag, size = 0x4, scoped, tag = 'scoped memory for tpu_custom_call.1']
    #allocation5 [shape = 'u8[16384]{0}', space=vmem, size = 0x4000, scoped, tag = 'input window, operand 1, single buffered']
    #allocation6 [shape = 's32[1]{0}', space=sflag, size = 0x4, scoped, tag = 'scoped memory for tpu_custom_call.1']
    #allocation7 [shape = 'u8[1024]{0}', space=vmem, size = 0x400, scoped, tag = 'output window, operand 0, single buffered']
    %8 = vsyncpa [#allocation3], 0
    %9 = vsyncpa [#allocation6], 0
    %10 = vsyncpa [#allocation4], 0
    // Predicated region
    $region2: #{tpu_custom_call.1} parent=1 // pred_check
      _
    $region3: #{tpu_custom_call.1} parent=1 // pred_check_branch
      %12 = sbr.rel (0) target = $region5
    $region4: #{tpu_custom_call.1} parent=1 // pred_region
      %s14 = ssub.s32 32, 32
      %15 = vsyncadd [#allocation3], %s14
      %s17 = sshll.u32 [#allocation2], 4
      %s18 = int_to_ptr.vmem [resolvable:$true] %s17
      %20 = dma.hbm_to_vmem [thread:$0]  %s0, 32, %s18, [#allocation3]
    $region5: #{tpu_custom_call.1} parent=1 // pred_fallthru
      _
    // Predicated region
    $region6: #{tpu_custom_call.1} parent=1 // pred_check
      _
    $region7: #{tpu_custom_call.1} parent=1 // pred_check_branch
      %22 = sbr.rel (0) target = $region9
    $region8: #{tpu_custom_call.1} parent=1 // pred_region
      %s24 = ssub.s32 512, 512
      %25 = vsyncadd [#allocation6], %s24
      %s26 = sshll.u32 [#allocation5], 4
      %s27 = int_to_ptr.vmem [resolvable:$true] %s26
      %32 = dma.hbm_to_vmem [thread:$0]  %s1, 512, %s27, [#allocation6], 128, 128, 8
    $region9: #{tpu_custom_call.1} parent=1 // pred_fallthru
      _
    // Predicated region
    $region10: #{tpu_custom_call.1} parent=1 // pred_check
      _
    $region11: #{tpu_custom_call.1} parent=1 // pred_check_branch
      %34 = sbr.rel (0) target = $region13
    $region12: #{tpu_custom_call.1} parent=1 // pred_region
      _
    $region13: #{tpu_custom_call.1} parent=1 // pred_fallthru
      _
    // Predicated region
    $region14: #{tpu_custom_call.1} parent=1 // pred_check
      _
    $region15: #{tpu_custom_call.1} parent=1 // pred_check_branch
      %36 = sbr.rel (0) target = $region17
    $region16: #{tpu_custom_call.1} parent=1 // pred_region
      %37 = dma.done [#allocation3], 32
    $region17: #{tpu_custom_call.1} parent=1 // pred_fallthru
      _
    // Predicated region
    $region18: #{tpu_custom_call.1} parent=1 // pred_check
      _
    $region19: #{tpu_custom_call.1} parent=1 // pred_check_branch
      %39 = sbr.rel (0) target = $region21
    $region20: #{tpu_custom_call.1} parent=1 // pred_region
      %40 = dma.done [#allocation6], 512
    $region21: #{tpu_custom_call.1} parent=1 // pred_fallthru
      _
    %v41 = vld [vmem:[#allocation2] sm:$0x3]
    %v42 = vld [vmem:[#allocation5] sm:$0xff]
    %v43 = vld [vmem:[#allocation5 + $0x8] sm:$0xff]
    %v44 = vld [vmem:[#allocation5 + $0x10] sm:$0xff]
    %v45 = vld [vmem:[#allocation5 + $0x18] sm:$0xff]
    %v46 = vld [vmem:[%s2] sm:$0x1]
    %v48 = vlaneseq
    %v49 = vshrl.u32 %v48, 7
    %v50 = vsub.s32 0, %v49
    %v51 = vrot.slane %v46, %v50
    %vm53 = vcmask 261120
    %v55 = vsel %vm53, %v41, 0
    %57 = vmatprep.subr.mxu0 0.0
    %58 = vmatpush1.msra.mxu0 %v42
    %59 = vmatprep.subr.mxu0 0.0
    %60 = vmatpush1.msra.mxu0 %v43
    %61 = vmatprep.subr.mxu0 0.0
    %62 = vmatpush1.msra.mxu0 %v44
    %63 = vmatprep.subr.mxu0 0.0
    %64 = vmatpush1.msra.mxu0 %v45
    %65 = vmatprep.subr.mxu0 0.0
    %66 = vmatpush1.msra.mxu0 0.0
    %67 = vmatprep.subr.mxu0 0.0
    %68 = vmatpush1.msra.mxu0 0.0
    %69 = vmatprep.subr.mxu0 0.0
    %70 = vmatpush1.msra.mxu0 0.0
    %71 = vmatprep.subr.mxu0 0.0
    %72 = vmatpush1.msra.mxu0 0.0
    %73 = vmatprep.subr.mxu0 0.0
    %74 = vmatpush1.msra.mxu0 0.0
    %75 = vmatprep.subr.mxu0 0.0
    %76 = vmatpush1.msra.mxu0 0.0
    %77 = vmatprep.subr.mxu0 0.0
    %78 = vmatpush1.msra.mxu0 0.0
    %79 = vmatprep.subr.mxu0 0.0
    %80 = vmatpush1.msra.mxu0 0.0
    %81 = vmatprep.subr.mxu0 0.0
    %82 = vmatpush1.msra.mxu0 0.0
    %83 = vmatprep.subr.mxu0 0.0
    %84 = vmatpush1.msra.mxu0 0.0
    %85 = vmatprep.subr.mxu0 0.0
    %86 = vmatpush1.msra.mxu0 0.0
    %87 = vmatprep.subr.mxu0 0.0
    %88 = vmatpush1.msra.mxu0 0.0
    %89 = vmatprep.subr.mxu0 0.0
    %90 = vmatpush1.msra.mxu0 0.0
    %91 = vmatprep.subr.mxu0 0.0
    %92 = vmatpush1.msra.mxu0 0.0
    %93 = vmatprep.subr.mxu0 0.0
    %94 = vmatpush1.msra.mxu0 0.0
    %95 = vmatprep.subr.mxu0 0.0
    %96 = vmatpush1.msra.mxu0 0.0
    %97 = vmatprep.subr.mxu0 0.0
    %98 = vmatpush1.msra.mxu0 0.0
    %99 = vmatprep.subr.mxu0 0.0
    %100 = vmatpush1.msra.mxu0 0.0
    %101 = vmatprep.subr.mxu0 0.0
    %102 = vmatpush1.msra.mxu0 0.0
    %103 = vmatprep.subr.mxu0 0.0
    %104 = vmatpush1.msra.mxu0 0.0
    %105 = vmatprep.subr.mxu0 0.0
    %106 = vmatpush1.msra.mxu0 0.0
    %107 = vmatprep.subr.mxu0 0.0
    %108 = vmatpush1.msra.mxu0 0.0
    %109 = vmatprep.subr.mxu0 0.0
    %110 = vmatpush1.msra.mxu0 0.0
    %111 = vmatprep.subr.mxu0 0.0
    %112 = vmatpush1.msra.mxu0 0.0
    %113 = vmatprep.subr.mxu0 0.0
    %114 = vmatpush1.msra.mxu0 0.0
    %115 = vmatprep.subr.mxu0 0.0
    %116 = vmatpush1.msra.mxu0 0.0
    %117 = vmatprep.subr.mxu0 0.0
    %118 = vmatpush1.msra.mxu0 0.0
    %119 = vmatprep.subr.mxu0 0.0
    %120 = vmatpush1.msra.mxu0 0.0
    %121 = vmatprep.mubr.f32.mxu0 0.0
    %122 = vmatmul.mubr.f32.gmra.mrb[0].mxu0 %v55
    %v123 = vpop.f32.mrb[0].mxu0
    %v124 = vadd.f32 %v51, %v123
    %v125 = vpop.f32.mrb[0].mxu0
    %126 = vdwg.mxu0
    %v127 = vtanh.pop %v124
    %vm128 = vcmask 254976
    %129 = vst.msk [vmem:[#allocation7] sm:$0x3] %vm128, %v127
    // Predicated region
    $region22: #{tpu_custom_call.1} parent=1 // pred_check
      _
    $region23: #{tpu_custom_call.1} parent=1 // pred_check_branch
      %131 = sbr.rel (0) target = $region25
    $region24: #{tpu_custom_call.1} parent=1 // pred_region
      %s133 = ssub.s32 32, 32
      %134 = vsyncadd [#allocation4], %s133
      %s136 = sshll.u32 [#allocation7], 4
      %s137 = int_to_ptr.vmem [resolvable:$true] %s136
      %139 = dma.vmem_to_hbm [thread:$0]  %s137, 32, %s3, [#allocation4]
    $region25: #{tpu_custom_call.1} parent=1 // pred_fallthru
      _
    // Predicated region
    $region26: #{tpu_custom_call.1} parent=1 // pred_check
      _
    $region27: #{tpu_custom_call.1} parent=1 // pred_check_branch
      %141 = sbr.rel (0) target = $region29
    $region28: #{tpu_custom_call.1} parent=1 // pred_region
      %142 = dma.done [#allocation4], 32
    $region29: #{tpu_custom_call.1} parent=1 // pred_fallthru
      _
    %143 = vsyncpa [#allocation3], 1
    %144 = vsyncpa [#allocation6], 1
    %145 = vsyncpa [#allocation4], 1

</llo_original>
